<compile_context>
chip_gen: v7x
topology: tpu7x:2x2x1
jax: 0.10.0
libtpu: 0.0.40
codegen_flags: <defaults>
</compile_context>

<pallas_src>
import functools

import jax
import jax.numpy as jnp
from jax.experimental import pallas as pl
from jax.experimental.pallas import tpu as pltpu


def _round_up(x: int, m: int) -> int:
    return ((x + m - 1) // m) * m


def ffn_kernel(x_ref, w1_ref, b1_ref, w2_ref, b2_ref, o_ref, acc_ref):
    # grid = (M_p // tm, d_ff_p // tf); axis 1 (d_ff) is the reduction axis
    # x_ref:  (tm, d_model_p)      bf16
    # w1_ref: (d_model_p, tf)      bf16
    # b1_ref: (1, tf)              f32
    # w2_ref: (tf, d_model_p)      bf16
    # b2_ref: (1, d_model_p)       f32
    # o_ref:  (tm, d_model_p)      f32 (output dtype)
    # acc_ref:(tm, d_model_p)      f32 VMEM scratch
    j = pl.program_id(1)

    @pl.when(j == 0)
    def _():
        acc_ref[...] = jnp.zeros_like(acc_ref)

    # first matmul on this d_ff slice, f32 accumulation on the MXU
    h = jnp.dot(x_ref[...], w1_ref[...], preferred_element_type=jnp.float32)
    h = h + b1_ref[...]            # bias broadcast over rows (f32)
    h = jnp.maximum(h, 0.0)        # ReLU (F.relu), f32 epilogue
    # dropout == identity in eval mode

    # second matmul: partial contraction over this d_ff slice
    acc_ref[...] += jnp.dot(h.astype(w2_ref.dtype), w2_ref[...],
                            preferred_element_type=jnp.float32)

    @pl.when(j == pl.num_programs(1) - 1)
    def _():
        o_ref[...] = (acc_ref[...] + b2_ref[...]).astype(o_ref.dtype)


@functools.partial(jax.jit, static_argnames=("tm", "tf"))
def feed_forward(x, w1, b1, w2, b2, *, tm=256, tf=512):
    """x: (B, S, d_model) float32; w1: (d_model, d_ff); b1: (d_ff,);
    w2: (d_ff, d_model); b2: (d_model,). Returns (B, S, d_model) float32."""
    B, S, d_model = x.shape
    d_ff = w1.shape[1]
    M = B * S

    # Padded, 128-aligned problem sizes (lane-dense tiles everywhere).
    d_model_p = _round_up(d_model, 128)
    tf_eff = min(tf, _round_up(d_ff, 128))
    d_ff_p = _round_up(d_ff, tf_eff)
    M_p = _round_up(M, tm)

    # Zero-padding is exact: padded x cols hit zero w1 rows; padded d_ff cols
    # have zero bias and zero w2 rows; padded output rows/cols are sliced off.
    x2d = jnp.pad(x.reshape(M, d_model),
                  ((0, M_p - M), (0, d_model_p - d_model))).astype(jnp.bfloat16)
    w1p = jnp.pad(w1, ((0, d_model_p - d_model),
                       (0, d_ff_p - d_ff))).astype(jnp.bfloat16)
    b1p = jnp.pad(b1.reshape(1, -1),
                  ((0, 0), (0, d_ff_p - d_ff))).astype(jnp.float32)
    w2p = jnp.pad(w2, ((0, d_ff_p - d_ff),
                       (0, d_model_p - d_model))).astype(jnp.bfloat16)
    b2p = jnp.pad(b2.reshape(1, -1),
                  ((0, 0), (0, d_model_p - d_model))).astype(jnp.float32)

    grid = (M_p // tm, d_ff_p // tf_eff)

    cost = pl.CostEstimate(
        flops=4 * M * d_model * d_ff,                       # two matmuls
        transcendentals=0,
        bytes_accessed=(M_p * d_model_p * (2 + 4)           # x (bf16) + out (f32)
                        + 2 * d_model_p * d_ff_p * 2        # w1 + w2 (bf16)
                        + (d_ff_p + d_model_p) * 4),        # biases (f32)
    )

    out2d = pl.pallas_call(
        ffn_kernel,
        out_shape=jax.ShapeDtypeStruct((M_p, d_model_p), jnp.float32),
        grid_spec=pltpu.PrefetchScalarGridSpec(
            num_scalar_prefetch=0,
            grid=grid,
            in_specs=[
                pl.BlockSpec((tm, d_model_p), lambda i, j: (i, 0)),   # x rows
                pl.BlockSpec((d_model_p, tf_eff), lambda i, j: (0, j)),  # w1 cols
                pl.BlockSpec((1, tf_eff), lambda i, j: (0, j)),          # b1 slice
                pl.BlockSpec((tf_eff, d_model_p), lambda i, j: (j, 0)),  # w2 rows
                pl.BlockSpec((1, d_model_p), lambda i, j: (0, 0)),       # b2
            ],
            out_specs=pl.BlockSpec((tm, d_model_p), lambda i, j: (i, 0)),
            scratch_shapes=[pltpu.VMEM((tm, d_model_p), jnp.float32)],
        ),
        compiler_params=pltpu.CompilerParams(
            dimension_semantics=("parallel", "arbitrary"),
            vmem_limit_bytes=64 * 1024 * 1024,
        ),
        cost_estimate=cost,
    )(x2d, w1p, b1p, w2p, b2p)

    return out2d[:M, :d_model].reshape(B, S, d_model)


def init_params(key, d_model, d_ff):
    """Deterministic init mimicking nn.Linear (uniform +-1/sqrt(fan_in)).
    Weights stored pre-transposed as (in, out); biases 1-D like nn.Linear."""
    k1, k2, k3, k4 = jax.random.split(key, 4)
    lim1 = 1.0 / jnp.sqrt(d_model)
    lim2 = 1.0 / jnp.sqrt(d_ff)
    w1 = jax.random.uniform(k1, (d_model, d_ff), jnp.float32, -lim1, lim1)
    b1 = jax.random.uniform(k2, (d_ff,), jnp.float32, -lim1, lim1)
    w2 = jax.random.uniform(k3, (d_ff, d_model), jnp.float32, -lim2, lim2)
    b2 = jax.random.uniform(k4, (d_model,), jnp.float32, -lim2, lim2)
    return w1, b1, w2, b2


if __name__ == "__main__":
    key = jax.random.PRNGKey(0)
    B, S, d_model, d_ff = 2, 8, 32, 64  # small shapes consistent with the module

    kx, kp = jax.random.split(key)
    x = jax.random.normal(kx, (B, S, d_model), jnp.float32)
    w1, b1, w2, b2 = init_params(kp, d_model, d_ff)

    out = feed_forward(x, w1, b1, w2, b2)
    out = jax.block_until_ready(out)

    # reference check (pure JAX f32, eval-mode dropout = identity);
    # bf16 matmul inputs -> relaxed tolerance
    ref = jnp.maximum(x @ w1 + b1, 0.0) @ w2 + b2
    assert out.shape == ref.shape
    assert jnp.allclose(out, ref, atol=5e-2, rtol=5e-2), "mismatch vs reference"

    print("KERNEL_OK")
</pallas_src>

<mosaic_0001>
module attributes {stable_mosaic.version = 11 : i64} {
  func.func @ffn_kernel(%arg0: i32, %arg1: i32, %arg2: memref<256x128xbf16, #tpu.memory_space<vmem>>, %arg3: memref<128x128xbf16, #tpu.memory_space<vmem>>, %arg4: memref<1x128xf32, #tpu.memory_space<vmem>>, %arg5: memref<128x128xbf16, #tpu.memory_space<vmem>>, %arg6: memref<1x128xf32, #tpu.memory_space<vmem>>, %arg7: memref<256x128xf32, #tpu.memory_space<vmem>>, %arg8: memref<256x128xf32, #tpu.memory_space<vmem>>) attributes {dimension_semantics = [#tpu.dimension_semantics<parallel>, #tpu.dimension_semantics<arbitrary>], iteration_bounds = array<i64: 1, 1>, scalar_prefetch = 0 : i64, scratch_operands = 1 : i64, tpu.core_type = #tpu.core_type<tc>, window_params = [{transform_indices = @transform_0, window_bounds = array<i64: 256, 128>}, {transform_indices = @transform_1, window_bounds = array<i64: 128, 128>}, {transform_indices = @transform_2, window_bounds = array<i64: 1, 128>}, {transform_indices = @transform_3, window_bounds = array<i64: 128, 128>}, {pipeline_mode = #tpu.pipeline_mode<synchronous>, transform_indices = @transform_4, window_bounds = array<i64: 1, 128>}, {transform_indices = @transform_5, window_bounds = array<i64: 256, 128>}]} {
    %c0_i32 = arith.constant 0 : i32
    %0 = arith.cmpi eq, %arg1, %c0_i32 : i32
    %1 = arith.extui %0 : i1 to i32
    %c0_i32_0 = arith.constant 0 : i32
    %2 = arith.cmpi ne, %1, %c0_i32_0 : i32
    scf.if %2 {
      %cst_16 = arith.constant 0.000000e+00 : f32
      %20 = vector.broadcast %cst_16 : f32 to vector<256x128xf32>
      %c0_17 = arith.constant 0 : index
      %c0_18 = arith.constant 0 : index
      %21 = vector.load %arg8[%c0_17, %c0_18] : memref<256x128xf32, #tpu.memory_space<vmem>>, vector<256x128xf32>
      tpu.vector_store %arg8[%c0_17, %c0_18], %20 {strides = array<i32>} : memref<256x128xf32, #tpu.memory_space<vmem>>, vector<256x128xf32>,
    } else {
    }
    %c0 = arith.constant 0 : index
    %c0_1 = arith.constant 0 : index
    %3 = vector.load %arg2[%c0, %c0_1] : memref<256x128xbf16, #tpu.memory_space<vmem>>, vector<256x128xbf16>
    %c0_2 = arith.constant 0 : index
    %c0_3 = arith.constant 0 : index
    %4 = vector.load %arg3[%c0_2, %c0_3] : memref<128x128xbf16, #tpu.memory_space<vmem>>, vector<128x128xbf16>
    %cst = arith.constant dense<0.000000e+00> : vector<256x128xf32>
    %5 = tpu.matmul %3, %4, %cst {dimension_numbers = #tpu.dot_dimension_numbers<[1], [0], [0], [1], [0, 0, 1, 1], [], []>} : vector<256x128xbf16>, vector<128x128xbf16>, vector<256x128xf32> -> vector<256x128xf32>
    %c0_4 = arith.constant 0 : index
    %c0_5 = arith.constant 0 : index
    %6 = vector.load %arg4[%c0_4, %c0_5] : memref<1x128xf32, #tpu.memory_space<vmem>>, vector<1x128xf32>
    %7 = vector.broadcast %6 : vector<1x128xf32> to vector<256x128xf32>
    %8 = arith.addf %5, %7 : vector<256x128xf32>
    %cst_6 = arith.constant 0.000000e+00 : f32
    %9 = vector.broadcast %cst_6 : f32 to vector<256x128xf32>
    %10 = arith.maximumf %8, %9 : vector<256x128xf32>
    %c0_7 = arith.constant 0 : index
    %c0_8 = arith.constant 0 : index
    %11 = vector.load %arg8[%c0_7, %c0_8] : memref<256x128xf32, #tpu.memory_space<vmem>>, vector<256x128xf32>
    %12 = arith.truncf %10 : vector<256x128xf32> to vector<256x128xbf16>
    %c0_9 = arith.constant 0 : index
    %c0_10 = arith.constant 0 : index
    %13 = vector.load %arg5[%c0_9, %c0_10] : memref<128x128xbf16, #tpu.memory_space<vmem>>, vector<128x128xbf16>
    %cst_11 = arith.constant dense<0.000000e+00> : vector<256x128xf32>
    %14 = tpu.matmul %12, %13, %cst_11 {dimension_numbers = #tpu.dot_dimension_numbers<[1], [0], [0], [1], [0, 0, 1, 1], [], []>} : vector<256x128xbf16>, vector<128x128xbf16>, vector<256x128xf32> -> vector<256x128xf32>
    %15 = arith.addf %11, %14 : vector<256x128xf32>
    %c0_12 = arith.constant 0 : index
    %c0_13 = arith.constant 0 : index
    %16 = vector.load %arg8[%c0_12, %c0_13] : memref<256x128xf32, #tpu.memory_space<vmem>>, vector<256x128xf32>
    tpu.vector_store %arg8[%c0_12, %c0_13], %15 {strides = array<i32>} : memref<256x128xf32, #tpu.memory_space<vmem>>, vector<256x128xf32>,
    %c0_i32_14 = arith.constant 0 : i32
    %17 = arith.cmpi eq, %arg1, %c0_i32_14 : i32
    %18 = arith.extui %17 : i1 to i32
    %c0_i32_15 = arith.constant 0 : i32
    %19 = arith.cmpi ne, %18, %c0_i32_15 : i32
    scf.if %19 {
      %c0_16 = arith.constant 0 : index
      %c0_17 = arith.constant 0 : index
      %20 = vector.load %arg8[%c0_16, %c0_17] : memref<256x128xf32, #tpu.memory_space<vmem>>, vector<256x128xf32>
      %c0_18 = arith.constant 0 : index
      %c0_19 = arith.constant 0 : index
      %21 = vector.load %arg6[%c0_18, %c0_19] : memref<1x128xf32, #tpu.memory_space<vmem>>, vector<1x128xf32>
      %22 = vector.broadcast %21 : vector<1x128xf32> to vector<256x128xf32>
      %23 = arith.addf %20, %22 : vector<256x128xf32>
      %c0_20 = arith.constant 0 : index
      %c0_21 = arith.constant 0 : index
      %24 = vector.load %arg7[%c0_20, %c0_21] : memref<256x128xf32, #tpu.memory_space<vmem>>, vector<256x128xf32>
      tpu.vector_store %arg7[%c0_20, %c0_21], %23 {strides = array<i32>} : memref<256x128xf32, #tpu.memory_space<vmem>>, vector<256x128xf32>,
    } else {
    }
    return
  }
  func.func @transform_0(%arg0: i32, %arg1: i32) -> (i32, i32) {
    %c0_i32 = arith.constant 0 : i32
    %c0_i32_0 = arith.constant 0 : i32
    return %arg0, %c0_i32 : i32, i32
  }
  func.func @transform_1(%arg0: i32, %arg1: i32) -> (i32, i32) {
    %c0_i32 = arith.constant 0 : i32
    %c0_i32_0 = arith.constant 0 : i32
    return %c0_i32, %arg1 : i32, i32
  }
  func.func @transform_2(%arg0: i32, %arg1: i32) -> (i32, i32) {
    %c0_i32 = arith.constant 0 : i32
    %c0_i32_0 = arith.constant 0 : i32
    return %c0_i32, %arg1 : i32, i32
  }
  func.func @transform_3(%arg0: i32, %arg1: i32) -> (i32, i32) {
    %c0_i32 = arith.constant 0 : i32
    %c0_i32_0 = arith.constant 0 : i32
    return %arg1, %c0_i32 : i32, i32
  }
  func.func @transform_4(%arg0: i32, %arg1: i32) -> (i32, i32) {
    %c0_i32 = arith.constant 0 : i32
    %c0_i32_0 = arith.constant 0 : i32
    %c0_i32_1 = arith.constant 0 : i32
    return %c0_i32, %c0_i32_0 : i32, i32
  }
  func.func @transform_5(%arg0: i32, %arg1: i32) -> (i32, i32) {
    %c0_i32 = arith.constant 0 : i32
    %c0_i32_0 = arith.constant 0 : i32
    return %arg0, %c0_i32 : i32, i32
  }
}

</mosaic_0001>

<llo_original>
// kernel: feed_forward.1
$region0: #{feed_forward.1}
  #allocation0 [shape = 'u32[]', space=smem, size = 0x4, offset = 0x4, fixed_abs, tag = 'smem constant byte address 0x4 - core index']
  #allocation1 [shape = 'u32[144,128]{1,0:T(1,128)}', space=vmem, size = 0x12000, scoped, tag = 'internal scratch']
  #allocation2 [shape = 'f32[256,128]{1,0:T(8,128)}', space=vmem, size = 0x20000, scoped, tag = 'scratch operand']
  %s0 = inlined_call_operand.hbm [shape: bf16[256,128], index: 0, kind: input, shape index: {}]
  %s1 = inlined_call_operand.hbm [shape: bf16[128,128], index: 1, kind: input, shape index: {}]
  %s2 = inlined_call_operand.hbm [shape: f32[1,128], index: 2, kind: input, shape index: {}]
  %s3 = inlined_call_operand.hbm [shape: bf16[128,128], index: 3, kind: input, shape index: {}]
  %s4 = inlined_call_operand.hbm [shape: f32[1,128], index: 4, kind: input, shape index: {}]
  %s5 = inlined_call_operand.hbm [shape: f32[256,128], index: 5, kind: output, shape index: {}]
  %s6 = sld [smem:[#allocation0]]
  $region58: #{feed_forward.1} parent=0
    _
  %s8 = ssub.s32 1, %s6
  %s9 = scalar_select 0, %s8, %s6
  $region1: #{feed_forward.1} parent=0
    #allocation3 [shape = 'u8[65536]{0}', space=vmem, size = 0x10000, scoped, tag = 'input window, operand 0, single buffered']
    #allocation4 [shape = 's32[1]{0}', space=sflag, size = 0x4, scoped, tag = 'scoped memory for feed_forward.1']
    #allocation5 [shape = 's32[1]{0}', space=sflag, size = 0x4, scoped, tag = 'scoped memory for feed_forward.1']
    #allocation6 [shape = 'u8[32768]{0}', space=vmem, size = 0x8000, scoped, tag = 'input window, operand 1, single buffered']
    #allocation7 [shape = 's32[1]{0}', space=sflag, size = 0x4, scoped, tag = 'scoped memory for feed_forward.1']
    #allocation8 [shape = 'u8[512]{0}', space=vmem, size = 0x400, scoped, tag = 'input window, operand 2, single buffered']
    #allocation9 [shape = 'u8[32768]{0}', space=vmem, size = 0x8000, scoped, tag = 'input window, operand 3, single buffered']
    #allocation10 [shape = 's32[1]{0}', space=sflag, size = 0x4, scoped, tag = 'scoped memory for feed_forward.1']
    #allocation11 [shape = 'u8[512]{0}', space=vmem, size = 0x400, scoped, tag = 'input window, operand 4, single buffered']
    #allocation12 [shape = 'u8[131072]{0}', space=vmem, size = 0x20000, scoped, tag = 'output window, operand 0, single buffered']
    %10 = vsyncpa [#allocation4], 0
    %11 = vsyncpa [#allocation7], 0
    %12 = vsyncpa [#allocation10], 0
    %13 = vsyncpa [#allocation5], 0
    // Predicated region
    $region2: #{feed_forward.1} parent=1 // pred_check
      _
    $region3: #{feed_forward.1} parent=1 // pred_check_branch
      %15 = sbr.rel (0) target = $region5
    $region4: #{feed_forward.1} parent=1 // pred_region
      %s17 = ssub.s32 2048, 2048
      %18 = vsyncadd [#allocation4], %s17
      %s19 = sshll.u32 [#allocation3], 4
      %s20 = int_to_ptr.vmem [resolvable:$true] %s19
      %25 = dma.hbm_to_vmem [thread:$0]  %s0, 2048, %s20, [#allocation4], 64, 64, 4
    $region5: #{feed_forward.1} parent=1 // pred_fallthru
      _
    // Predicated region
    $region6: #{feed_forward.1} parent=1 // pred_check
      _
    $region7: #{feed_forward.1} parent=1 // pred_check_branch
      %27 = sbr.rel (0) target = $region9
    $region8: #{feed_forward.1} parent=1 // pred_region
      %s29 = ssub.s32 1024, 1024
      %30 = vsyncadd [#allocation7], %s29
      %s31 = sshll.u32 [#allocation6], 4
      %s32 = int_to_ptr.vmem [resolvable:$true] %s31
      %37 = dma.hbm_to_vmem [thread:$0]  %s1, 1024, %s32, [#allocation7], 64, 64, 4
    $region9: #{feed_forward.1} parent=1 // pred_fallthru
      _
    // Predicated region
    $region10: #{feed_forward.1} parent=1 // pred_check
      _
    $region11: #{feed_forward.1} parent=1 // pred_check_branch
      %39 = sbr.rel (0) target = $region13
    $region12: #{feed_forward.1} parent=1 // pred_region
      %s41 = ssub.s32 16, 16
      %42 = vsyncadd [#allocation7], %s41
      %s44 = sshll.u32 [#allocation8], 4
      %s45 = int_to_ptr.vmem [resolvable:$true] %s44
      %47 = dma.hbm_to_vmem [thread:$0]  %s2, 16, %s45, [#allocation7]
    $region13: #{feed_forward.1} parent=1 // pred_fallthru
      _
    // Predicated region
    $region14: #{feed_forward.1} parent=1 // pred_check
      _
    $region15: #{feed_forward.1} parent=1 // pred_check_branch
      %49 = sbr.rel (0) target = $region17
    $region16: #{feed_forward.1} parent=1 // pred_region
      %s51 = ssub.s32 1024, 1024
      %52 = vsyncadd [#allocation10], %s51
      %s53 = sshll.u32 [#allocation9], 4
      %s54 = int_to_ptr.vmem [resolvable:$true] %s53
      %59 = dma.hbm_to_vmem [thread:$0]  %s3, 1024, %s54, [#allocation10], 64, 64, 4
    $region17: #{feed_forward.1} parent=1 // pred_fallthru
      _
    // Predicated region
    $region18: #{feed_forward.1} parent=1 // pred_check
      _
    $region19: #{feed_forward.1} parent=1 // pred_check_branch
      %61 = sbr.rel (0) target = $region21
    $region20: #{feed_forward.1} parent=1 // pred_region
      %s63 = ssub.s32 16, 16
      %64 = vsyncadd [#allocation10], %s63
      %s66 = sshll.u32 [#allocation11], 4
      %s67 = int_to_ptr.vmem [resolvable:$true] %s66
      %69 = dma.hbm_to_vmem [thread:$0]  %s4, 16, %s67, [#allocation10]
    $region21: #{feed_forward.1} parent=1 // pred_fallthru
      _
    // Predicated region
    $region22: #{feed_forward.1} parent=1 // pred_check
      _
    $region23: #{feed_forward.1} parent=1 // pred_check_branch
      %71 = sbr.rel (0) target = $region25
    $region24: #{feed_forward.1} parent=1 // pred_region
      %72 = dma.done [#allocation4], 2048
    $region25: #{feed_forward.1} parent=1 // pred_fallthru
      _
    // Predicated region
    $region26: #{feed_forward.1} parent=1 // pred_check
      _
    $region27: #{feed_forward.1} parent=1 // pred_check_branch
      %74 = sbr.rel (0) target = $region29
    $region28: #{feed_forward.1} parent=1 // pred_region
      %75 = dma.done [#allocation7], 1024
    $region29: #{feed_forward.1} parent=1 // pred_fallthru
      _
    // Predicated region
    $region30: #{feed_forward.1} parent=1 // pred_check
      _
    $region31: #{feed_forward.1} parent=1 // pred_check_branch
      %77 = sbr.rel (0) target = $region33
    $region32: #{feed_forward.1} parent=1 // pred_region
      %78 = dma.done [#allocation7], 16
    $region33: #{feed_forward.1} parent=1 // pred_fallthru
      _
    // Predicated region
    $region34: #{feed_forward.1} parent=1 // pred_check
      _
    $region35: #{feed_forward.1} parent=1 // pred_check_branch
      %80 = sbr.rel (0) target = $region37
    $region36: #{feed_forward.1} parent=1 // pred_region
      %81 = dma.done [#allocation10], 1024
    $region37: #{feed_forward.1} parent=1 // pred_fallthru
      _
    // Predicated region
    $region38: #{feed_forward.1} parent=1 // pred_check
      _
    $region39: #{feed_forward.1} parent=1 // pred_check_branch
      %83 = sbr.rel (0) target = $region41
    $region40: #{feed_forward.1} parent=1 // pred_region
      %84 = dma.done [#allocation10], 16
    $region41: #{feed_forward.1} parent=1 // pred_fallthru
      _
    %p86 = scmp.eq.s32.totalorder 0, 0
    // Predicated region
    $region42: #{feed_forward.1} parent=1 // pred_check
      %p87 = pneg %p86
    $region43: #{feed_forward.1} parent=1 // pred_check_branch
      %89 = sbr.rel (%p87) target = $region45
    $region44: #{feed_forward.1} parent=1 // pred_region
      %90 = vst [vmem:[#allocation2] sm:$0xff] 0.0
      %91 = vst [vmem:[#allocation2 + $0x8] sm:$0xff] 0.0
      %92 = vst [vmem:[#allocation2 + $0x10] sm:$0xff] 0.0
      %93 = vst [vmem:[#allocation2 + $0x18] sm:$0xff] 0.0
      %94 = vst [vmem:[#allocation2 + $0x20] sm:$0xff] 0.0
      %95 = vst [vmem:[#allocation2 + $0x28] sm:$0xff] 0.0
      %96 = vst [vmem:[#allocation2 + $0x30] sm:$0xff] 0.0
      %97 = vst [vmem:[#allocation2 + $0x38] sm:$0xff] 0.0
      %98 = vst [vmem:[#allocation2 + $0x40] sm:$0xff] 0.0
      %99 = vst [vmem:[#allocation2 + $0x48] sm:$0xff] 0.0
      %100 = vst [vmem:[#allocation2 + $0x50] sm:$0xff] 0.0
      %101 = vst [vmem:[#allocation2 + $0x58] sm:$0xff] 0.0
      %102 = vst [vmem:[#allocation2 + $0x60] sm:$0xff] 0.0
      %103 = vst [vmem:[#allocation2 + $0x68] sm:$0xff] 0.0
      %104 = vst [vmem:[#allocation2 + $0x70] sm:$0xff] 0.0
      %105 = vst [vmem:[#allocation2 + $0x78] sm:$0xff] 0.0
      %106 = vst [vmem:[#allocation2 + $0x80] sm:$0xff] 0.0
      %107 = vst [vmem:[#allocation2 + $0x88] sm:$0xff] 0.0
      %108 = vst [vmem:[#allocation2 + $0x90] sm:$0xff] 0.0
      %109 = vst [vmem:[#allocation2 + $0x98] sm:$0xff] 0.0
      %110 = vst [vmem:[#allocation2 + $0xa0] sm:$0xff] 0.0
      %111 = vst [vmem:[#allocation2 + $0xa8] sm:$0xff] 0.0
      %112 = vst [vmem:[#allocation2 + $0xb0] sm:$0xff] 0.0
      %113 = vst [vmem:[#allocation2 + $0xb8] sm:$0xff] 0.0
      %114 = vst [vmem:[#allocation2 + $0xc0] sm:$0xff] 0.0
      %115 = vst [vmem:[#allocation2 + $0xc8] sm:$0xff] 0.0
      %116 = vst [vmem:[#allocation2 + $0xd0] sm:$0xff] 0.0
      %117 = vst [vmem:[#allocation2 + $0xd8] sm:$0xff] 0.0
      %118 = vst [vmem:[#allocation2 + $0xe0] sm:$0xff] 0.0
      %119 = vst [vmem:[#allocation2 + $0xe8] sm:$0xff] 0.0
      %120 = vst [vmem:[#allocation2 + $0xf0] sm:$0xff] 0.0
      %121 = vst [vmem:[#allocation2 + $0xf8] sm:$0xff] 0.0
    $region45: #{feed_forward.1} parent=1 // pred_fallthru
      _
    %v122 = vld [vmem:[#allocation3] sm:$0xf]
    %v123 = vld [vmem:[#allocation3 + $0x4] sm:$0xf]
    %v124 = vld [vmem:[#allocation3 + $0x8] sm:$0xf]
    %v125 = vld [vmem:[#allocation3 + $0xc] sm:$0xf]
    %v126 = vld [vmem:[#allocation3 + $0x10] sm:$0xf]
    %v127 = vld [vmem:[#allocation3 + $0x14] sm:$0xf]
    %v128 = vld [vmem:[#allocation3 + $0x18] sm:$0xf]
    %v129 = vld [vmem:[#allocation3 + $0x1c] sm:$0xf]
    %v130 = vld [vmem:[#allocation3 + $0x20] sm:$0xf]
    %v131 = vld [vmem:[#allocation3 + $0x24] sm:$0xf]
    %v132 = vld [vmem:[#allocation3 + $0x28] sm:$0xf]
    %v133 = vld [vmem:[#allocation3 + $0x2c] sm:$0xf]
    %v134 = vld [vmem:[#allocation3 + $0x30] sm:$0xf]
    %v135 = vld [vmem:[#allocation3 + $0x34] sm:$0xf]
    %v136 = vld [vmem:[#allocation3 + $0x38] sm:$0xf]
    %v137 = vld [vmem:[#allocation3 + $0x3c] sm:$0xf]
    %v138 = vld [vmem:[#allocation3 + $0x40] sm:$0xf]
    %v139 = vld [vmem:[#allocation3 + $0x44] sm:$0xf]
    %v140 = vld [vmem:[#allocation3 + $0x48] sm:$0xf]
    %v141 = vld [vmem:[#allocation3 + $0x4c] sm:$0xf]
    %v142 = vld [vmem:[#allocation3 + $0x50] sm:$0xf]
    %v143 = vld [vmem:[#allocation3 + $0x54] sm:$0xf]
    %v144 = vld [vmem:[#allocation3 + $0x58] sm:$0xf]
    %v145 = vld [vmem:[#allocation3 + $0x5c] sm:$0xf]
    %v146 = vld [vmem:[#allocation3 + $0x60] sm:$0xf]
    %v147 = vld [vmem:[#allocation3 + $0x64] sm:$0xf]
    %v148 = vld [vmem:[#allocation3 + $0x68] sm:$0xf]
    %v149 = vld [vmem:[#allocation3 + $0x6c] sm:$0xf]
    %v150 = vld [vmem:[#allocation3 + $0x70] sm:$0xf]
    %v151 = vld [vmem:[#allocation3 + $0x74] sm:$0xf]
    %v152 = vld [vmem:[#allocation3 + $0x78] sm:$0xf]
    %v153 = vld [vmem:[#allocation3 + $0x7c] sm:$0xf]
    %v154 = vld [vmem:[#allocation6] sm:$0xf]
    %v155 = vld [vmem:[#allocation6 + $0x4] sm:$0xf]
    %v156 = vld [vmem:[#allocation6 + $0x8] sm:$0xf]
    %v157 = vld [vmem:[#allocation6 + $0xc] sm:$0xf]
    %v158 = vld [vmem:[#allocation6 + $0x10] sm:$0xf]
    %v159 = vld [vmem:[#allocation6 + $0x14] sm:$0xf]
    %v160 = vld [vmem:[#allocation6 + $0x18] sm:$0xf]
    %v161 = vld [vmem:[#allocation6 + $0x1c] sm:$0xf]
    %v162 = vld [vmem:[#allocation6 + $0x20] sm:$0xf]
    %v163 = vld [vmem:[#allocation6 + $0x24] sm:$0xf]
    %v164 = vld [vmem:[#allocation6 + $0x28] sm:$0xf]
    %v165 = vld [vmem:[#allocation6 + $0x2c] sm:$0xf]
    %v166 = vld [vmem:[#allocation6 + $0x30] sm:$0xf]
    %v167 = vld [vmem:[#allocation6 + $0x34] sm:$0xf]
    %v168 = vld [vmem:[#allocation6 + $0x38] sm:$0xf]
    %v169 = vld [vmem:[#allocation6 + $0x3c] sm:$0xf]
    %v170 = vld [vmem:[#allocation8] sm:$0x1]
    %v172 = vlaneseq
    %v173 = vshrl.u32 %v172, 7
    %v174 = vsub.s32 0, %v173
    %v175 = vrot.slane %v170, %v174
    %v209 = vunpack.c.l.b16 %v122
    %v210 = vunpack.c.l.b16 %v123
    %v211 = vunpack.c.l.b16 %v124
    %v212 = vunpack.c.l.b16 %v125
    %v213 = vunpack.c.l.b16 %v126
    %v214 = vunpack.c.l.b16 %v127
    %v215 = vunpack.c.l.b16 %v128
    %v216 = vunpack.c.l.b16 %v129
    %v217 = vunpack.c.l.b16 %v130
    %v218 = vunpack.c.l.b16 %v131
    %v219 = vunpack.c.l.b16 %v132
    %v220 = vunpack.c.l.b16 %v133
    %v221 = vunpack.c.l.b16 %v134
    %v222 = vunpack.c.l.b16 %v135
    %v223 = vunpack.c.l.b16 %v136
    %v224 = vunpack.c.l.b16 %v137
    %v225 = vunpack.c.l.b16 %v138
    %v226 = vunpack.c.l.b16 %v139
    %v227 = vunpack.c.l.b16 %v140
    %v228 = vunpack.c.l.b16 %v141
    %v229 = vunpack.c.l.b16 %v142
    %v230 = vunpack.c.l.b16 %v143
    %v231 = vunpack.c.l.b16 %v144
    %v232 = vunpack.c.l.b16 %v145
    %v233 = vunpack.c.l.b16 %v146
    %v234 = vunpack.c.l.b16 %v147
    %v235 = vunpack.c.l.b16 %v148
    %v236 = vunpack.c.l.b16 %v149
    %v237 = vunpack.c.l.b16 %v150
    %v238 = vunpack.c.l.b16 %v151
    %v239 = vunpack.c.l.b16 %v152
    %v240 = vunpack.c.l.b16 %v153
    %v241 = vpack.c.b16 %v210, %v209
    %v242 = vpack.c.b16 %v212, %v211
    %v243 = vpack.c.b16 %v214, %v213
    %v244 = vpack.c.b16 %v216, %v215
    %v245 = vpack.c.b16 %v218, %v217
    %v246 = vpack.c.b16 %v220, %v219
    %v247 = vpack.c.b16 %v222, %v221
    %v248 = vpack.c.b16 %v224, %v223
    %v249 = vpack.c.b16 %v226, %v225
    %v250 = vpack.c.b16 %v228, %v227
    %v251 = vpack.c.b16 %v230, %v229
    %v252 = vpack.c.b16 %v232, %v231
    %v253 = vpack.c.b16 %v234, %v233
    %v254 = vpack.c.b16 %v236, %v235
    %v255 = vpack.c.b16 %v238, %v237
    %v256 = vpack.c.b16 %v240, %v239
    %v289 = vunpack.c.l.b16 %v154
    %v290 = vunpack.c.l.b16 %v155
    %v291 = vunpack.c.l.b16 %v156
    %v292 = vunpack.c.l.b16 %v157
    %v293 = vunpack.c.l.b16 %v158
    %v294 = vunpack.c.l.b16 %v159
    %v295 = vunpack.c.l.b16 %v160
    %v296 = vunpack.c.l.b16 %v161
    %v297 = vunpack.c.l.b16 %v162
    %v298 = vunpack.c.l.b16 %v163
    %v299 = vunpack.c.l.b16 %v164
    %v300 = vunpack.c.l.b16 %v165
    %v301 = vunpack.c.l.b16 %v166
    %v302 = vunpack.c.l.b16 %v167
    %v303 = vunpack.c.l.b16 %v168
    %v304 = vunpack.c.l.b16 %v169
    %v305 = vpack.c.b16 %v290, %v289
    %v306 = vpack.c.b16 %v292, %v291
    %v307 = vpack.c.b16 %v294, %v293
    %v308 = vpack.c.b16 %v296, %v295
    %v309 = vpack.c.b16 %v298, %v297
    %v310 = vpack.c.b16 %v300, %v299
    %v311 = vpack.c.b16 %v302, %v301
    %v312 = vpack.c.b16 %v304, %v303
    %321 = vmatprep.subr.bf16.mxu0 0
    %322 = vmatpush1.bf16.msra.mxu0 %v305
    %323 = vmatprep.subr.bf16.mxu0 0
    %324 = vmatpush1.bf16.msra.mxu0 %v306
    %325 = vmatprep.subr.bf16.mxu0 0
    %326 = vmatpush1.bf16.msra.mxu0 %v307
    %327 = vmatprep.subr.bf16.mxu0 0
    %328 = vmatpush1.bf16.msra.mxu0 %v308
    %329 = vmatprep.subr.bf16.mxu0 0
    %330 = vmatpush1.bf16.msra.mxu0 %v309
    %331 = vmatprep.subr.bf16.mxu0 0
    %332 = vmatpush1.bf16.msra.mxu0 %v310
    %333 = vmatprep.subr.bf16.mxu0 0
    %334 = vmatpush1.bf16.msra.mxu0 %v311
    %335 = vmatprep.subr.bf16.mxu0 0
    %336 = vmatpush1.bf16.msra.mxu0 %v312
    %337 = vmatprep.subr.bf16.mxu0 0
    %338 = vmatpush1.bf16.msra.mxu0 0
    %339 = vmatprep.subr.bf16.mxu0 0
    %340 = vmatpush1.bf16.msra.mxu0 0
    %341 = vmatprep.subr.bf16.mxu0 0
    %342 = vmatpush1.bf16.msra.mxu0 0
    %343 = vmatprep.subr.bf16.mxu0 0
    %344 = vmatpush1.bf16.msra.mxu0 0
    %345 = vmatprep.subr.bf16.mxu0 0
    %346 = vmatpush1.bf16.msra.mxu0 0
    %347 = vmatprep.subr.bf16.mxu0 0
    %348 = vmatpush1.bf16.msra.mxu0 0
    %349 = vmatprep.subr.bf16.mxu0 0
    %350 = vmatpush1.bf16.msra.mxu0 0
    %351 = vmatprep.subr.bf16.mxu0 0
    %352 = vmatpush1.bf16.msra.mxu0 0
    %353 = vmatprep.mubr.bf16.mxu0 0
    %354 = vmatmul.mubr.bf16.gmra.mrb[0].mxu0 %v241
    %v355 = vpop.f32.mrb[0].mxu0
    %v356 = vadd.f32 %v175, %v355
    %v357 = vpop.f32.mrb[0].mxu0
    %v358 = vpop.f32.mrb[0].mxu0
    %v359 = vadd.f32 %v175, %v358
    %v360 = vpop.f32.mrb[0].mxu0
    %361 = vmatprep.mubr.bf16.mxu0 0
    %362 = vmatmul.mubr.bf16.gmra.mrb[0].mxu0 %v242
    %v363 = vpop.f32.mrb[0].mxu0
    %v364 = vadd.f32 %v175, %v363
    %v365 = vpop.f32.mrb[0].mxu0
    %v366 = vpop.f32.mrb[0].mxu0
    %v367 = vadd.f32 %v175, %v366
    %v368 = vpop.f32.mrb[0].mxu0
    %369 = vmatprep.mubr.bf16.mxu0 0
    %370 = vmatmul.mubr.bf16.gmra.mrb[0].mxu0 %v243
    %v371 = vpop.f32.mrb[0].mxu0
    %v372 = vadd.f32 %v175, %v371
    %v373 = vpop.f32.mrb[0].mxu0
    %v374 = vpop.f32.mrb[0].mxu0
    %v375 = vadd.f32 %v175, %v374
    %v376 = vpop.f32.mrb[0].mxu0
    %377 = vmatprep.mubr.bf16.mxu0 0
    %378 = vmatmul.mubr.bf16.gmra.mrb[0].mxu0 %v244
    %v379 = vpop.f32.mrb[0].mxu0
    %v380 = vadd.f32 %v175, %v379
    %v381 = vpop.f32.mrb[0].mxu0
    %v382 = vpop.f32.mrb[0].mxu0
    %v383 = vadd.f32 %v175, %v382
    %v384 = vpop.f32.mrb[0].mxu0
    %385 = vmatprep.mubr.bf16.mxu0 0
    %386 = vmatmul.mubr.bf16.gmra.mrb[0].mxu0 %v245
    %v387 = vpop.f32.mrb[0].mxu0
    %v388 = vadd.f32 %v175, %v387
    %v389 = vpop.f32.mrb[0].mxu0
    %v390 = vpop.f32.mrb[0].mxu0
    %v391 = vadd.f32 %v175, %v390
    %v392 = vpop.f32.mrb[0].mxu0
    %393 = vmatprep.mubr.bf16.mxu0 0
    %394 = vmatmul.mubr.bf16.gmra.mrb[0].mxu0 %v246
    %v395 = vpop.f32.mrb[0].mxu0
    %v396 = vadd.f32 %v175, %v395
    %v397 = vpop.f32.mrb[0].mxu0
    %v398 = vpop.f32.mrb[0].mxu0
    %v399 = vadd.f32 %v175, %v398
    %v400 = vpop.f32.mrb[0].mxu0
    %401 = vmatprep.mubr.bf16.mxu0 0
    %402 = vmatmul.mubr.bf16.gmra.mrb[0].mxu0 %v247
    %v403 = vpop.f32.mrb[0].mxu0
    %v404 = vadd.f32 %v175, %v403
    %v405 = vpop.f32.mrb[0].mxu0
    %v406 = vpop.f32.mrb[0].mxu0
    %v407 = vadd.f32 %v175, %v406
    %v408 = vpop.f32.mrb[0].mxu0
    %409 = vmatprep.mubr.bf16.mxu0 0
    %410 = vmatmul.mubr.bf16.gmra.mrb[0].mxu0 %v248
    %v411 = vpop.f32.mrb[0].mxu0
    %v412 = vadd.f32 %v175, %v411
    %v413 = vpop.f32.mrb[0].mxu0
    %v414 = vpop.f32.mrb[0].mxu0
    %v415 = vadd.f32 %v175, %v414
    %v416 = vpop.f32.mrb[0].mxu0
    %417 = vmatprep.mubr.bf16.mxu0 0
    %418 = vmatmul.mubr.bf16.gmra.mrb[0].mxu0 %v249
    %v419 = vpop.f32.mrb[0].mxu0
    %v420 = vadd.f32 %v175, %v419
    %v421 = vpop.f32.mrb[0].mxu0
    %v422 = vpop.f32.mrb[0].mxu0
    %v423 = vadd.f32 %v175, %v422
    %v424 = vpop.f32.mrb[0].mxu0
    %425 = vmatprep.mubr.bf16.mxu0 0
    %426 = vmatmul.mubr.bf16.gmra.mrb[0].mxu0 %v250
    %v427 = vpop.f32.mrb[0].mxu0
    %v428 = vadd.f32 %v175, %v427
    %v429 = vpop.f32.mrb[0].mxu0
    %v430 = vpop.f32.mrb[0].mxu0
    %v431 = vadd.f32 %v175, %v430
    %v432 = vpop.f32.mrb[0].mxu0
    %433 = vmatprep.mubr.bf16.mxu0 0
    %434 = vmatmul.mubr.bf16.gmra.mrb[0].mxu0 %v251
    %v435 = vpop.f32.mrb[0].mxu0
    %v436 = vadd.f32 %v175, %v435
    %v437 = vpop.f32.mrb[0].mxu0
    %v438 = vpop.f32.mrb[0].mxu0
    %v439 = vadd.f32 %v175, %v438
    %v440 = vpop.f32.mrb[0].mxu0
    %441 = vmatprep.mubr.bf16.mxu0 0
    %442 = vmatmul.mubr.bf16.gmra.mrb[0].mxu0 %v252
    %v443 = vpop.f32.mrb[0].mxu0
    %v444 = vadd.f32 %v175, %v443
    %v445 = vpop.f32.mrb[0].mxu0
    %v446 = vpop.f32.mrb[0].mxu0
    %v447 = vadd.f32 %v175, %v446
    %v448 = vpop.f32.mrb[0].mxu0
    %449 = vmatprep.mubr.bf16.mxu0 0
    %450 = vmatmul.mubr.bf16.gmra.mrb[0].mxu0 %v253
    %v451 = vpop.f32.mrb[0].mxu0
    %v452 = vadd.f32 %v175, %v451
    %v453 = vpop.f32.mrb[0].mxu0
    %v454 = vpop.f32.mrb[0].mxu0
    %v455 = vadd.f32 %v175, %v454
    %v456 = vpop.f32.mrb[0].mxu0
    %457 = vmatprep.mubr.bf16.mxu0 0
    %458 = vmatmul.mubr.bf16.gmra.mrb[0].mxu0 %v254
    %v459 = vpop.f32.mrb[0].mxu0
    %v460 = vadd.f32 %v175, %v459
    %v461 = vpop.f32.mrb[0].mxu0
    %v462 = vpop.f32.mrb[0].mxu0
    %v463 = vadd.f32 %v175, %v462
    %v464 = vpop.f32.mrb[0].mxu0
    %465 = vmatprep.mubr.bf16.mxu0 0
    %466 = vmatmul.mubr.bf16.gmra.mrb[0].mxu0 %v255
    %v467 = vpop.f32.mrb[0].mxu0
    %v468 = vadd.f32 %v175, %v467
    %v469 = vpop.f32.mrb[0].mxu0
    %v470 = vpop.f32.mrb[0].mxu0
    %v471 = vadd.f32 %v175, %v470
    %v472 = vpop.f32.mrb[0].mxu0
    %473 = vmatprep.mubr.bf16.mxu0 0
    %474 = vmatmul.mubr.bf16.gmra.mrb[0].mxu0 %v256
    %v475 = vpop.f32.mrb[0].mxu0
    %v476 = vadd.f32 %v175, %v475
    %v477 = vpop.f32.mrb[0].mxu0
    %v478 = vpop.f32.mrb[0].mxu0
    %v479 = vadd.f32 %v175, %v478
    %v480 = vpop.f32.mrb[0].mxu0
    %481 = vdwg.mxu0
    %v482 = vmax.f32 %v356, 0.0
    %v483 = vmax.f32 %v359, 0.0
    %v484 = vmax.f32 %v364, 0.0
    %v485 = vmax.f32 %v367, 0.0
    %v486 = vmax.f32 %v372, 0.0
    %v487 = vmax.f32 %v375, 0.0
    %v488 = vmax.f32 %v380, 0.0
    %v489 = vmax.f32 %v383, 0.0
    %v490 = vmax.f32 %v388, 0.0
    %v491 = vmax.f32 %v391, 0.0
    %v492 = vmax.f32 %v396, 0.0
    %v493 = vmax.f32 %v399, 0.0
    %v494 = vmax.f32 %v404, 0.0
    %v495 = vmax.f32 %v407, 0.0
    %v496 = vmax.f32 %v412, 0.0
    %v497 = vmax.f32 %v415, 0.0
    %v498 = vmax.f32 %v420, 0.0
    %v499 = vmax.f32 %v423, 0.0
    %v500 = vmax.f32 %v428, 0.0
    %v501 = vmax.f32 %v431, 0.0
    %v502 = vmax.f32 %v436, 0.0
    %v503 = vmax.f32 %v439, 0.0
    %v504 = vmax.f32 %v444, 0.0
    %v505 = vmax.f32 %v447, 0.0
    %v506 = vmax.f32 %v452, 0.0
    %v507 = vmax.f32 %v455, 0.0
    %v508 = vmax.f32 %v460, 0.0
    %v509 = vmax.f32 %v463, 0.0
    %v510 = vmax.f32 %v468, 0.0
    %v511 = vmax.f32 %v471, 0.0
    %v512 = vmax.f32 %v476, 0.0
    %v513 = vmax.f32 %v479, 0.0
    %v514 = vld [vmem:[#allocation2] sm:$0xff]
    %v515 = vld [vmem:[#allocation2 + $0x8] sm:$0xff]
    %v516 = vld [vmem:[#allocation2 + $0x10] sm:$0xff]
    %v517 = vld [vmem:[#allocation2 + $0x18] sm:$0xff]
    %v518 = vld [vmem:[#allocation2 + $0x20] sm:$0xff]
    %v519 = vld [vmem:[#allocation2 + $0x28] sm:$0xff]
    %v520 = vld [vmem:[#allocation2 + $0x30] sm:$0xff]
    %v521 = vld [vmem:[#allocation2 + $0x38] sm:$0xff]
    %v522 = vld [vmem:[#allocation2 + $0x40] sm:$0xff]
    %v523 = vld [vmem:[#allocation2 + $0x48] sm:$0xff]
    %v524 = vld [vmem:[#allocation2 + $0x50] sm:$0xff]
    %v525 = vld [vmem:[#allocation2 + $0x58] sm:$0xff]
    %v526 = vld [vmem:[#allocation2 + $0x60] sm:$0xff]
    %v527 = vld [vmem:[#allocation2 + $0x68] sm:$0xff]
    %v528 = vld [vmem:[#allocation2 + $0x70] sm:$0xff]
    %v529 = vld [vmem:[#allocation2 + $0x78] sm:$0xff]
    %v530 = vld [vmem:[#allocation2 + $0x80] sm:$0xff]
    %v531 = vld [vmem:[#allocation2 + $0x88] sm:$0xff]
    %v532 = vld [vmem:[#allocation2 + $0x90] sm:$0xff]
    %v533 = vld [vmem:[#allocation2 + $0x98] sm:$0xff]
    %v534 = vld [vmem:[#allocation2 + $0xa0] sm:$0xff]
    %v535 = vld [vmem:[#allocation2 + $0xa8] sm:$0xff]
    %v536 = vld [vmem:[#allocation2 + $0xb0] sm:$0xff]
    %v537 = vld [vmem:[#allocation2 + $0xb8] sm:$0xff]
    %v538 = vld [vmem:[#allocation2 + $0xc0] sm:$0xff]
    %v539 = vld [vmem:[#allocation2 + $0xc8] sm:$0xff]
    %v540 = vld [vmem:[#allocation2 + $0xd0] sm:$0xff]
    %v541 = vld [vmem:[#allocation2 + $0xd8] sm:$0xff]
    %v542 = vld [vmem:[#allocation2 + $0xe0] sm:$0xff]
    %v543 = vld [vmem:[#allocation2 + $0xe8] sm:$0xff]
    %v544 = vld [vmem:[#allocation2 + $0xf0] sm:$0xff]
    %v545 = vld [vmem:[#allocation2 + $0xf8] sm:$0xff]
    %v546 = vpack.c.bf16 %v483, %v482
    %v547 = vpack.c.bf16 %v485, %v484
    %v548 = vpack.c.bf16 %v487, %v486
    %v549 = vpack.c.bf16 %v489, %v488
    %v550 = vpack.c.bf16 %v491, %v490
    %v551 = vpack.c.bf16 %v493, %v492
    %v552 = vpack.c.bf16 %v495, %v494
    %v553 = vpack.c.bf16 %v497, %v496
    %v554 = vpack.c.bf16 %v499, %v498
    %v555 = vpack.c.bf16 %v501, %v500
    %v556 = vpack.c.bf16 %v503, %v502
    %v557 = vpack.c.bf16 %v505, %v504
    %v558 = vpack.c.bf16 %v507, %v506
    %v559 = vpack.c.bf16 %v509, %v508
    %v560 = vpack.c.bf16 %v511, %v510
    %v561 = vpack.c.bf16 %v513, %v512
    %v562 = vld [vmem:[#allocation9] sm:$0xf]
    %v563 = vld [vmem:[#allocation9 + $0x4] sm:$0xf]
    %v564 = vld [vmem:[#allocation9 + $0x8] sm:$0xf]
    %v565 = vld [vmem:[#allocation9 + $0xc] sm:$0xf]
    %v566 = vld [vmem:[#allocation9 + $0x10] sm:$0xf]
    %v567 = vld [vmem:[#allocation9 + $0x14] sm:$0xf]
    %v568 = vld [vmem:[#allocation9 + $0x18] sm:$0xf]
    %v569 = vld [vmem:[#allocation9 + $0x1c] sm:$0xf]
    %v570 = vld [vmem:[#allocation9 + $0x20] sm:$0xf]
    %v571 = vld [vmem:[#allocation9 + $0x24] sm:$0xf]
    %v572 = vld [vmem:[#allocation9 + $0x28] sm:$0xf]
    %v573 = vld [vmem:[#allocation9 + $0x2c] sm:$0xf]
    %v574 = vld [vmem:[#allocation9 + $0x30] sm:$0xf]
    %v575 = vld [vmem:[#allocation9 + $0x34] sm:$0xf]
    %v576 = vld [vmem:[#allocation9 + $0x38] sm:$0xf]
    %v577 = vld [vmem:[#allocation9 + $0x3c] sm:$0xf]
    %v594 = vunpack.c.l.b16 %v562
    %v595 = vunpack.c.l.b16 %v563
    %v596 = vunpack.c.l.b16 %v564
    %v597 = vunpack.c.l.b16 %v565
    %v598 = vunpack.c.l.b16 %v566
    %v599 = vunpack.c.l.b16 %v567
    %v600 = vunpack.c.l.b16 %v568
    %v601 = vunpack.c.l.b16 %v569
    %v602 = vunpack.c.l.b16 %v570
    %v603 = vunpack.c.l.b16 %v571
    %v604 = vunpack.c.l.b16 %v572
    %v605 = vunpack.c.l.b16 %v573
    %v606 = vunpack.c.l.b16 %v574
    %v607 = vunpack.c.l.b16 %v575
    %v608 = vunpack.c.l.b16 %v576
    %v609 = vunpack.c.l.b16 %v577
    %v610 = vpack.c.b16 %v595, %v594
    %v611 = vpack.c.b16 %v597, %v596
    %v612 = vpack.c.b16 %v599, %v598
    %v613 = vpack.c.b16 %v601, %v600
    %v614 = vpack.c.b16 %v603, %v602
    %v615 = vpack.c.b16 %v605, %v604
    %v616 = vpack.c.b16 %v607, %v606
    %v617 = vpack.c.b16 %v609, %v608
    %626 = vmatprep.subr.bf16.mxu0 0
    %627 = vmatpush1.bf16.msra.mxu0 %v610
    %628 = vmatprep.subr.bf16.mxu0 0
    %629 = vmatpush1.bf16.msra.mxu0 %v611
    %630 = vmatprep.subr.bf16.mxu0 0
    %631 = vmatpush1.bf16.msra.mxu0 %v612
    %632 = vmatprep.subr.bf16.mxu0 0
    %633 = vmatpush1.bf16.msra.mxu0 %v613
    %634 = vmatprep.subr.bf16.mxu0 0
    %635 = vmatpush1.bf16.msra.mxu0 %v614
    %636 = vmatprep.subr.bf16.mxu0 0
    %637 = vmatpush1.bf16.msra.mxu0 %v615
    %638 = vmatprep.subr.bf16.mxu0 0
    %639 = vmatpush1.bf16.msra.mxu0 %v616
    %640 = vmatprep.subr.bf16.mxu0 0
    %641 = vmatpush1.bf16.msra.mxu0 %v617
    %642 = vmatprep.subr.bf16.mxu0 0
    %643 = vmatpush1.bf16.msra.mxu0 0
    %644 = vmatprep.subr.bf16.mxu0 0
    %645 = vmatpush1.bf16.msra.mxu0 0
    %646 = vmatprep.subr.bf16.mxu0 0
    %647 = vmatpush1.bf16.msra.mxu0 0
    %648 = vmatprep.subr.bf16.mxu0 0
    %649 = vmatpush1.bf16.msra.mxu0 0
    %650 = vmatprep.subr.bf16.mxu0 0
    %651 = vmatpush1.bf16.msra.mxu0 0
    %652 = vmatprep.subr.bf16.mxu0 0
    %653 = vmatpush1.bf16.msra.mxu0 0
    %654 = vmatprep.subr.bf16.mxu0 0
    %655 = vmatpush1.bf16.msra.mxu0 0
    %656 = vmatprep.subr.bf16.mxu0 0
    %657 = vmatpush1.bf16.msra.mxu0 0
    %658 = vmatprep.mubr.bf16.mxu0 0
    %659 = vmatmul.mubr.bf16.gmra.mrb[0].mxu0 %v546
    %v660 = vpop.f32.mrb[0].mxu0
    %v661 = vadd.f32 0.0, %v660
    %v662 = vpop.f32.mrb[0].mxu0
    %v663 = vpop.f32.mrb[0].mxu0
    %v664 = vadd.f32 0.0, %v663
    %v665 = vpop.f32.mrb[0].mxu0
    %666 = vmatprep.mubr.bf16.mxu0 0
    %667 = vmatmul.mubr.bf16.gmra.mrb[0].mxu0 %v547
    %v668 = vpop.f32.mrb[0].mxu0
    %v669 = vadd.f32 0.0, %v668
    %v670 = vpop.f32.mrb[0].mxu0
    %v671 = vpop.f32.mrb[0].mxu0
    %v672 = vadd.f32 0.0, %v671
    %v673 = vpop.f32.mrb[0].mxu0
    %674 = vmatprep.mubr.bf16.mxu0 0
    %675 = vmatmul.mubr.bf16.gmra.mrb[0].mxu0 %v548
    %v676 = vpop.f32.mrb[0].mxu0
    %v677 = vadd.f32 0.0, %v676
    %v678 = vpop.f32.mrb[0].mxu0
    %v679 = vpop.f32.mrb[0].mxu0
    %v680 = vadd.f32 0.0, %v679
    %v681 = vpop.f32.mrb[0].mxu0
    %682 = vmatprep.mubr.bf16.mxu0 0
    %683 = vmatmul.mubr.bf16.gmra.mrb[0].mxu0 %v549
    %v684 = vpop.f32.mrb[0].mxu0
    %v685 = vadd.f32 0.0, %v684
    %v686 = vpop.f32.mrb[0].mxu0
    %v687 = vpop.f32.mrb[0].mxu0
    %v688 = vadd.f32 0.0, %v687
    %v689 = vpop.f32.mrb[0].mxu0
    %690 = vmatprep.mubr.bf16.mxu0 0
    %691 = vmatmul.mubr.bf16.gmra.mrb[0].mxu0 %v550
    %v692 = vpop.f32.mrb[0].mxu0
    %v693 = vadd.f32 0.0, %v692
    %v694 = vpop.f32.mrb[0].mxu0
    %v695 = vpop.f32.mrb[0].mxu0
    %v696 = vadd.f32 0.0, %v695
    %v697 = vpop.f32.mrb[0].mxu0
    %698 = vmatprep.mubr.bf16.mxu0 0
    %699 = vmatmul.mubr.bf16.gmra.mrb[0].mxu0 %v551
    %v700 = vpop.f32.mrb[0].mxu0
    %v701 = vadd.f32 0.0, %v700
    %v702 = vpop.f32.mrb[0].mxu0
    %v703 = vpop.f32.mrb[0].mxu0
    %v704 = vadd.f32 0.0, %v703
    %v705 = vpop.f32.mrb[0].mxu0
    %706 = vmatprep.mubr.bf16.mxu0 0
    %707 = vmatmul.mubr.bf16.gmra.mrb[0].mxu0 %v552
    %v708 = vpop.f32.mrb[0].mxu0
    %v709 = vadd.f32 0.0, %v708
    %v710 = vpop.f32.mrb[0].mxu0
    %v711 = vpop.f32.mrb[0].mxu0
    %v712 = vadd.f32 0.0, %v711
    %v713 = vpop.f32.mrb[0].mxu0
    %714 = vmatprep.mubr.bf16.mxu0 0
    %715 = vmatmul.mubr.bf16.gmra.mrb[0].mxu0 %v553
    %v716 = vpop.f32.mrb[0].mxu0
    %v717 = vadd.f32 0.0, %v716
    %v718 = vpop.f32.mrb[0].mxu0
    %v719 = vpop.f32.mrb[0].mxu0
    %v720 = vadd.f32 0.0, %v719
    %v721 = vpop.f32.mrb[0].mxu0
    %722 = vmatprep.mubr.bf16.mxu0 0
    %723 = vmatmul.mubr.bf16.gmra.mrb[0].mxu0 %v554
    %v724 = vpop.f32.mrb[0].mxu0
    %v725 = vadd.f32 0.0, %v724
    %v726 = vpop.f32.mrb[0].mxu0
    %v727 = vpop.f32.mrb[0].mxu0
    %v728 = vadd.f32 0.0, %v727
    %v729 = vpop.f32.mrb[0].mxu0
    %730 = vmatprep.mubr.bf16.mxu0 0
    %731 = vmatmul.mubr.bf16.gmra.mrb[0].mxu0 %v555
    %v732 = vpop.f32.mrb[0].mxu0
    %v733 = vadd.f32 0.0, %v732
    %v734 = vpop.f32.mrb[0].mxu0
    %v735 = vpop.f32.mrb[0].mxu0
    %v736 = vadd.f32 0.0, %v735
    %v737 = vpop.f32.mrb[0].mxu0
    %738 = vmatprep.mubr.bf16.mxu0 0
    %739 = vmatmul.mubr.bf16.gmra.mrb[0].mxu0 %v556
    %v740 = vpop.f32.mrb[0].mxu0
    %v741 = vadd.f32 0.0, %v740
    %v742 = vpop.f32.mrb[0].mxu0
    %v743 = vpop.f32.mrb[0].mxu0
    %v744 = vadd.f32 0.0, %v743
    %v745 = vpop.f32.mrb[0].mxu0
    %746 = vmatprep.mubr.bf16.mxu0 0
    %747 = vmatmul.mubr.bf16.gmra.mrb[0].mxu0 %v557
    %v748 = vpop.f32.mrb[0].mxu0
    %v749 = vadd.f32 0.0, %v748
    %v750 = vpop.f32.mrb[0].mxu0
    %v751 = vpop.f32.mrb[0].mxu0
    %v752 = vadd.f32 0.0, %v751
    %v753 = vpop.f32.mrb[0].mxu0
    %754 = vmatprep.mubr.bf16.mxu0 0
    %755 = vmatmul.mubr.bf16.gmra.mrb[0].mxu0 %v558
    %v756 = vpop.f32.mrb[0].mxu0
    %v757 = vadd.f32 0.0, %v756
    %v758 = vpop.f32.mrb[0].mxu0
    %v759 = vpop.f32.mrb[0].mxu0
    %v760 = vadd.f32 0.0, %v759
    %v761 = vpop.f32.mrb[0].mxu0
    %762 = vmatprep.mubr.bf16.mxu0 0
    %763 = vmatmul.mubr.bf16.gmra.mrb[0].mxu0 %v559
    %v764 = vpop.f32.mrb[0].mxu0
    %v765 = vadd.f32 0.0, %v764
    %v766 = vpop.f32.mrb[0].mxu0
    %v767 = vpop.f32.mrb[0].mxu0
    %v768 = vadd.f32 0.0, %v767
    %v769 = vpop.f32.mrb[0].mxu0
    %770 = vmatprep.mubr.bf16.mxu0 0
    %771 = vmatmul.mubr.bf16.gmra.mrb[0].mxu0 %v560
    %v772 = vpop.f32.mrb[0].mxu0
    %v773 = vadd.f32 0.0, %v772
    %v774 = vpop.f32.mrb[0].mxu0
    %v775 = vpop.f32.mrb[0].mxu0
    %v776 = vadd.f32 0.0, %v775
    %v777 = vpop.f32.mrb[0].mxu0
    %778 = vmatprep.mubr.bf16.mxu0 0
    %779 = vmatmul.mubr.bf16.gmra.mrb[0].mxu0 %v561
    %v780 = vpop.f32.mrb[0].mxu0
    %v781 = vadd.f32 0.0, %v780
    %v782 = vpop.f32.mrb[0].mxu0
    %v783 = vpop.f32.mrb[0].mxu0
    %v784 = vadd.f32 0.0, %v783
    %v785 = vpop.f32.mrb[0].mxu0
    %786 = vdwg.mxu0
    %v787 = vadd.f32 %v514, %v661
    %v788 = vadd.f32 %v515, %v664
    %v789 = vadd.f32 %v516, %v669
    %v790 = vadd.f32 %v517, %v672
    %v791 = vadd.f32 %v518, %v677
    %v792 = vadd.f32 %v519, %v680
    %v793 = vadd.f32 %v520, %v685
    %v794 = vadd.f32 %v521, %v688
    %v795 = vadd.f32 %v522, %v693
    %v796 = vadd.f32 %v523, %v696
    %v797 = vadd.f32 %v524, %v701
    %v798 = vadd.f32 %v525, %v704
    %v799 = vadd.f32 %v526, %v709
    %v800 = vadd.f32 %v527, %v712
    %v801 = vadd.f32 %v528, %v717
    %v802 = vadd.f32 %v529, %v720
    %v803 = vadd.f32 %v530, %v725
    %v804 = vadd.f32 %v531, %v728
    %v805 = vadd.f32 %v532, %v733
    %v806 = vadd.f32 %v533, %v736
    %v807 = vadd.f32 %v534, %v741
    %v808 = vadd.f32 %v535, %v744
    %v809 = vadd.f32 %v536, %v749
    %v810 = vadd.f32 %v537, %v752
    %v811 = vadd.f32 %v538, %v757
    %v812 = vadd.f32 %v539, %v760
    %v813 = vadd.f32 %v540, %v765
    %v814 = vadd.f32 %v541, %v768
    %v815 = vadd.f32 %v542, %v773
    %v816 = vadd.f32 %v543, %v776
    %v817 = vadd.f32 %v544, %v781
    %v818 = vadd.f32 %v545, %v784
    %819 = vst [vmem:[#allocation2] sm:$0xff] %v787
    %820 = vst [vmem:[#allocation2 + $0x8] sm:$0xff] %v788
    %821 = vst [vmem:[#allocation2 + $0x10] sm:$0xff] %v789
    %822 = vst [vmem:[#allocation2 + $0x18] sm:$0xff] %v790
    %823 = vst [vmem:[#allocation2 + $0x20] sm:$0xff] %v791
    %824 = vst [vmem:[#allocation2 + $0x28] sm:$0xff] %v792
    %825 = vst [vmem:[#allocation2 + $0x30] sm:$0xff] %v793
    %826 = vst [vmem:[#allocation2 + $0x38] sm:$0xff] %v794
    %827 = vst [vmem:[#allocation2 + $0x40] sm:$0xff] %v795
    %828 = vst [vmem:[#allocation2 + $0x48] sm:$0xff] %v796
    %829 = vst [vmem:[#allocation2 + $0x50] sm:$0xff] %v797
    %830 = vst [vmem:[#allocation2 + $0x58] sm:$0xff] %v798
    %831 = vst [vmem:[#allocation2 + $0x60] sm:$0xff] %v799
    %832 = vst [vmem:[#allocation2 + $0x68] sm:$0xff] %v800
    %833 = vst [vmem:[#allocation2 + $0x70] sm:$0xff] %v801
    %834 = vst [vmem:[#allocation2 + $0x78] sm:$0xff] %v802
    %835 = vst [vmem:[#allocation2 + $0x80] sm:$0xff] %v803
    %836 = vst [vmem:[#allocation2 + $0x88] sm:$0xff] %v804
    %837 = vst [vmem:[#allocation2 + $0x90] sm:$0xff] %v805
    %838 = vst [vmem:[#allocation2 + $0x98] sm:$0xff] %v806
    %839 = vst [vmem:[#allocation2 + $0xa0] sm:$0xff] %v807
    %840 = vst [vmem:[#allocation2 + $0xa8] sm:$0xff] %v808
    %841 = vst [vmem:[#allocation2 + $0xb0] sm:$0xff] %v809
    %842 = vst [vmem:[#allocation2 + $0xb8] sm:$0xff] %v810
    %843 = vst [vmem:[#allocation2 + $0xc0] sm:$0xff] %v811
    %844 = vst [vmem:[#allocation2 + $0xc8] sm:$0xff] %v812
    %845 = vst [vmem:[#allocation2 + $0xd0] sm:$0xff] %v813
    %846 = vst [vmem:[#allocation2 + $0xd8] sm:$0xff] %v814
    %847 = vst [vmem:[#allocation2 + $0xe0] sm:$0xff] %v815
    %848 = vst [vmem:[#allocation2 + $0xe8] sm:$0xff] %v816
    %849 = vst [vmem:[#allocation2 + $0xf0] sm:$0xff] %v817
    %850 = vst [vmem:[#allocation2 + $0xf8] sm:$0xff] %v818
    // Predicated region
    $region46: #{feed_forward.1} parent=1 // pred_check
      %p851 = pneg %p86
    $region47: #{feed_forward.1} parent=1 // pred_check_branch
      %853 = sbr.rel (%p851) target = $region49
    $region48: #{feed_forward.1} parent=1 // pred_region
      %v854 = vld [vmem:[#allocation2] sm:$0xff]
      %v855 = vld [vmem:[#allocation2 + $0x8] sm:$0xff]
      %v856 = vld [vmem:[#allocation2 + $0x10] sm:$0xff]
      %v857 = vld [vmem:[#allocation2 + $0x18] sm:$0xff]
      %v858 = vld [vmem:[#allocation2 + $0x20] sm:$0xff]
      %v859 = vld [vmem:[#allocation2 + $0x28] sm:$0xff]
      %v860 = vld [vmem:[#allocation2 + $0x30] sm:$0xff]
      %v861 = vld [vmem:[#allocation2 + $0x38] sm:$0xff]
      %v862 = vld [vmem:[#allocation2 + $0x40] sm:$0xff]
      %v863 = vld [vmem:[#allocation2 + $0x48] sm:$0xff]
      %v864 = vld [vmem:[#allocation2 + $0x50] sm:$0xff]
      %v865 = vld [vmem:[#allocation2 + $0x58] sm:$0xff]
      %v866 = vld [vmem:[#allocation2 + $0x60] sm:$0xff]
      %v867 = vld [vmem:[#allocation2 + $0x68] sm:$0xff]
      %v868 = vld [vmem:[#allocation2 + $0x70] sm:$0xff]
      %v869 = vld [vmem:[#allocation2 + $0x78] sm:$0xff]
      %v870 = vld [vmem:[#allocation2 + $0x80] sm:$0xff]
      %v871 = vld [vmem:[#allocation2 + $0x88] sm:$0xff]
      %v872 = vld [vmem:[#allocation2 + $0x90] sm:$0xff]
      %v873 = vld [vmem:[#allocation2 + $0x98] sm:$0xff]
      %v874 = vld [vmem:[#allocation2 + $0xa0] sm:$0xff]
      %v875 = vld [vmem:[#allocation2 + $0xa8] sm:$0xff]
      %v876 = vld [vmem:[#allocation2 + $0xb0] sm:$0xff]
      %v877 = vld [vmem:[#allocation2 + $0xb8] sm:$0xff]
      %v878 = vld [vmem:[#allocation2 + $0xc0] sm:$0xff]
      %v879 = vld [vmem:[#allocation2 + $0xc8] sm:$0xff]
      %v880 = vld [vmem:[#allocation2 + $0xd0] sm:$0xff]
      %v881 = vld [vmem:[#allocation2 + $0xd8] sm:$0xff]
      %v882 = vld [vmem:[#allocation2 + $0xe0] sm:$0xff]
      %v883 = vld [vmem:[#allocation2 + $0xe8] sm:$0xff]
      %v884 = vld [vmem:[#allocation2 + $0xf0] sm:$0xff]
      %v885 = vld [vmem:[#allocation2 + $0xf8] sm:$0xff]
      %v886 = vld [vmem:[#allocation11] sm:$0x1]
      %v888 = vlaneseq
      %v889 = vshrl.u32 %v888, 7
      %v890 = vsub.s32 0, %v889
      %v891 = vrot.slane %v886, %v890
      %v893 = vadd.f32 %v854, %v891
      %v894 = vadd.f32 %v855, %v891
      %v895 = vadd.f32 %v856, %v891
      %v896 = vadd.f32 %v857, %v891
      %v897 = vadd.f32 %v858, %v891
      %v898 = vadd.f32 %v859, %v891
      %v899 = vadd.f32 %v860, %v891
      %v900 = vadd.f32 %v861, %v891
      %v901 = vadd.f32 %v862, %v891
      %v902 = vadd.f32 %v863, %v891
      %v903 = vadd.f32 %v864, %v891
      %v904 = vadd.f32 %v865, %v891
      %v905 = vadd.f32 %v866, %v891
      %v906 = vadd.f32 %v867, %v891
      %v907 = vadd.f32 %v868, %v891
      %v908 = vadd.f32 %v869, %v891
      %v909 = vadd.f32 %v870, %v891
      %v910 = vadd.f32 %v871, %v891
      %v911 = vadd.f32 %v872, %v891
      %v912 = vadd.f32 %v873, %v891
      %v913 = vadd.f32 %v874, %v891
      %v914 = vadd.f32 %v875, %v891
      %v915 = vadd.f32 %v876, %v891
      %v916 = vadd.f32 %v877, %v891
      %v917 = vadd.f32 %v878, %v891
      %v918 = vadd.f32 %v879, %v891
      %v919 = vadd.f32 %v880, %v891
      %v920 = vadd.f32 %v881, %v891
      %v921 = vadd.f32 %v882, %v891
      %v922 = vadd.f32 %v883, %v891
      %v923 = vadd.f32 %v884, %v891
      %v924 = vadd.f32 %v885, %v891
      %925 = vst [vmem:[#allocation12] sm:$0xff] %v893
      %926 = vst [vmem:[#allocation12 + $0x8] sm:$0xff] %v894
      %927 = vst [vmem:[#allocation12 + $0x10] sm:$0xff] %v895
      %928 = vst [vmem:[#allocation12 + $0x18] sm:$0xff] %v896
      %929 = vst [vmem:[#allocation12 + $0x20] sm:$0xff] %v897
      %930 = vst [vmem:[#allocation12 + $0x28] sm:$0xff] %v898
      %931 = vst [vmem:[#allocation12 + $0x30] sm:$0xff] %v899
      %932 = vst [vmem:[#allocation12 + $0x38] sm:$0xff] %v900
      %933 = vst [vmem:[#allocation12 + $0x40] sm:$0xff] %v901
      %934 = vst [vmem:[#allocation12 + $0x48] sm:$0xff] %v902
      %935 = vst [vmem:[#allocation12 + $0x50] sm:$0xff] %v903
      %936 = vst [vmem:[#allocation12 + $0x58] sm:$0xff] %v904
      %937 = vst [vmem:[#allocation12 + $0x60] sm:$0xff] %v905
      %938 = vst [vmem:[#allocation12 + $0x68] sm:$0xff] %v906
      %939 = vst [vmem:[#allocation12 + $0x70] sm:$0xff] %v907
      %940 = vst [vmem:[#allocation12 + $0x78] sm:$0xff] %v908
      %941 = vst [vmem:[#allocation12 + $0x80] sm:$0xff] %v909
      %942 = vst [vmem:[#allocation12 + $0x88] sm:$0xff] %v910
      %943 = vst [vmem:[#allocation12 + $0x90] sm:$0xff] %v911
      %944 = vst [vmem:[#allocation12 + $0x98] sm:$0xff] %v912
      %945 = vst [vmem:[#allocation12 + $0xa0] sm:$0xff] %v913
      %946 = vst [vmem:[#allocation12 + $0xa8] sm:$0xff] %v914
      %947 = vst [vmem:[#allocation12 + $0xb0] sm:$0xff] %v915
      %948 = vst [vmem:[#allocation12 + $0xb8] sm:$0xff] %v916
      %949 = vst [vmem:[#allocation12 + $0xc0] sm:$0xff] %v917
      %950 = vst [vmem:[#allocation12 + $0xc8] sm:$0xff] %v918
      %951 = vst [vmem:[#allocation12 + $0xd0] sm:$0xff] %v919
      %952 = vst [vmem:[#allocation12 + $0xd8] sm:$0xff] %v920
      %953 = vst [vmem:[#allocation12 + $0xe0] sm:$0xff] %v921
      %954 = vst [vmem:[#allocation12 + $0xe8] sm:$0xff] %v922
      %955 = vst [vmem:[#allocation12 + $0xf0] sm:$0xff] %v923
      %956 = vst [vmem:[#allocation12 + $0xf8] sm:$0xff] %v924
    $region49: #{feed_forward.1} parent=1 // pred_fallthru
      _
    // Predicated region
    $region50: #{feed_forward.1} parent=1 // pred_check
      _
    $region51: #{feed_forward.1} parent=1 // pred_check_branch
      %958 = sbr.rel (0) target = $region53
    $region52: #{feed_forward.1} parent=1 // pred_region
      %s960 = ssub.s32 4096, 4096
      %961 = vsyncadd [#allocation5], %s960
      %s962 = sshll.u32 [#allocation12], 4
      %s963 = int_to_ptr.vmem [resolvable:$true] %s962
      %968 = dma.vmem_to_hbm [thread:$0]  %s963, 4096, %s5, [#allocation5], 128, 128, 8
    $region53: #{feed_forward.1} parent=1 // pred_fallthru
      _
    // Predicated region
    $region54: #{feed_forward.1} parent=1 // pred_check
      _
    $region55: #{feed_forward.1} parent=1 // pred_check_branch
      %970 = sbr.rel (0) target = $region57
    $region56: #{feed_forward.1} parent=1 // pred_region
      %971 = dma.done [#allocation5], 4096
    $region57: #{feed_forward.1} parent=1 // pred_fallthru
      _
    %972 = vsyncpa [#allocation4], 1
    %973 = vsyncpa [#allocation7], 1
    %974 = vsyncpa [#allocation10], 1
    %975 = vsyncpa [#allocation5], 1

</llo_original>
